<compile_context>
chip_gen: v5e
topology: v5e:2x2
jax: 0.10.0
libtpu: 0.0.40
codegen_flags: <defaults>
</compile_context>

<pallas_src>
import math
import numpy as np

import jax
import jax.numpy as jnp
from jax.experimental import pallas as pl
from jax.experimental.pallas import tpu as pltpu


# ----------------------------- parameter setup ------------------------------

def _hamming_periodic(n: int) -> np.ndarray:
    # scipy.signal.get_window('hamming', n, fftbins=True)  (periodic hamming)
    k = np.arange(n)
    return 0.54 - 0.46 * np.cos(2.0 * np.pi * k / n)


def _init_istft_weight(window_len: int, nfft: int, window: np.ndarray) -> np.ndarray:
    # Mirrors ConvFFT.init_kernel(inverse=True); returns weight[:, 0, :] of
    # shape (C = nfft+2, K = window_len), float32.
    fourier_basis = np.fft.rfft(np.eye(nfft))[:window_len]      # (K, nfft//2+1) complex
    real, imag = np.real(fourier_basis), np.imag(fourier_basis)
    kernel = np.concatenate([real, imag], 1).T                  # (nfft+2, K), float64
    kernel = np.linalg.pinv(kernel).T                           # (nfft+2, K)
    kernel = kernel.astype(np.float32)
    kernel = kernel * window.astype(np.float32)[None, :]        # *= window (last dim)
    return kernel


def _round_up(v: int, m: int) -> int:
    return ((v + m - 1) // m) * m


# ------------------------------- Pallas kernel -------------------------------

def _make_kernel(*, hop: int, hop_pad: int, n_chunks: int, Tt: int, H: int,
                 compute_dtype):
    def kernel(x_ref, halo_ref, wt_ref, inv_ref, out_ref):
        w = wt_ref[...]                                    # (Kp, C), pre-cast on host
        xm = x_ref[0].astype(compute_dtype)                # (C, Tt) pristine tile
        # Main MXU matmul on the lane-aligned input tile (no assembly copy).
        frames = jnp.dot(w, xm, preferred_element_type=jnp.float32)   # (Kp, Tt)
        acc = frames[0:hop_pad, :]                         # chunk j = 0
        if H > 0:
            # Tiny halo matmul for the H frames preceding this tile.
            xh = halo_ref[0, 0].astype(compute_dtype)      # (C, H)
            fh = jnp.dot(w, xh, preferred_element_type=jnp.float32)   # (Kp, H)
            for j in range(1, n_chunks):
                r0 = j * hop_pad                           # 8-aligned sublane start
                hj = fh[r0:r0 + hop_pad, H - j:H]          # first j output columns
                fj = frames[r0:r0 + hop_pad, :Tt - j]      # remaining columns
                acc = acc + jnp.concatenate([hj, fj], axis=1)
        out_ref[0, 0] = (acc * inv_ref[...])[0:hop, :].astype(out_ref.dtype)
    return kernel


def _istft_pallas(x_pad, halo, wt, inv, *, hop: int, hop_pad: int, n_chunks: int,
                  Tt: int, compute_dtype):
    """x_pad: (B, C, T_pad) f32 (native NCL); halo: (B, nT, C, Hs) f32;
    wt: (Kp, C) chunk-padded W^T in compute_dtype; inv: (hop_pad, Tt) f32.

    Returns (B, nT, hop, Tt): out[b, t, r, q] = normalized transposed-conv
    output at sample ((t*Tt + q)*hop + r).
    """
    B, C, T_pad = x_pad.shape
    nT = T_pad // Tt
    Kp = wt.shape[0]
    H = n_chunks - 1
    Hs = halo.shape[-1]

    kernel = _make_kernel(hop=hop, hop_pad=hop_pad, n_chunks=n_chunks, Tt=Tt,
                          H=H, compute_dtype=compute_dtype)

    return pl.pallas_call(
        kernel,
        out_shape=jax.ShapeDtypeStruct((B, nT, hop, Tt), jnp.float32),
        grid_spec=pltpu.PrefetchScalarGridSpec(
            num_scalar_prefetch=0,
            grid=(B, nT),
            in_specs=[
                pl.BlockSpec((1, C, Tt), lambda b, t: (b, 0, t)),        # x tile (NCL)
                pl.BlockSpec((1, 1, C, Hs), lambda b, t: (b, t, 0, 0)),  # halo frames
                pl.BlockSpec((Kp, C), lambda b, t: (0, 0)),              # W^T (resident)
                pl.BlockSpec((hop_pad, Tt), lambda b, t: (0, 0)),        # 1/(coeff+eps) (resident)
            ],
            out_specs=pl.BlockSpec((1, 1, hop, Tt), lambda b, t: (b, t, 0, 0)),
        ),
        compiler_params=pltpu.CompilerParams(
            dimension_semantics=("parallel", "parallel")),
    )(x_pad, halo, wt, inv)


# ------------------------------ module wrapper -------------------------------

class ConviSTFTPallas:
    def __init__(self, window_len: int, hop_size=None, nfft=None, window="hamming",
                 t_tile: int = 512, compute_dtype=jnp.float32):
        assert window == "hamming"
        self.window_len = window_len
        self.hop_size = hop_size if hop_size else window_len // 2
        self.nfft = nfft if nfft else int(2 ** math.ceil(math.log2(window_len)))
        self.t_tile = t_tile
        # Set compute_dtype=jnp.bfloat16 on v5e/v6e/v7x if the accuracy budget
        # allows (accumulation stays f32 via preferred_element_type).
        self.compute_dtype = compute_dtype
        assert self.hop_size <= window_len

        self.window = _hamming_periodic(window_len)                           # float64
        self.weight = _init_istft_weight(window_len, self.nfft, self.window)  # (C, K) f32

        hop, K = self.hop_size, window_len
        C = self.weight.shape[0]
        self.n_chunks = n = int(math.ceil(K / hop))
        self.hop_pad = hop_pad = _round_up(hop, 8)
        Kp = n * hop_pad

        # Chunked, sublane-padded, transposed weight:
        #   wt[j*hop_pad + r, c] = weight[c, j*hop + r]   (zero rows elsewhere)
        wt = np.zeros((Kp, C), np.float32)
        for j in range(n):
            width = min(hop, K - j * hop)
            wt[j * hop_pad:j * hop_pad + width, :] = \
                self.weight[:, j * hop:j * hop + width].T
        self.wt = jnp.asarray(wt).astype(compute_dtype)      # pre-cast on host

        # Steady-state overlap-add normalization 1/(sum_j window^2[j*hop+r] + eps).
        # Exact for every sample surviving the [pad:-pad] crop (see header note).
        w2 = np.zeros((n * hop,), np.float64)
        w2[:K] = self.window.astype(np.float32).astype(np.float64) ** 2
        c_ss = w2.reshape(n, hop).sum(axis=0)                 # (hop,)
        inv = np.zeros((hop_pad,), np.float32)
        inv[:hop] = (1.0 / (c_ss + 1e-8)).astype(np.float32)
        self.inv_ss = jnp.asarray(inv)

    def __call__(self, x, phase=None):
        if phase is not None:  # glue: magnitude/phase -> real/imag
            x = jnp.concatenate([x * jnp.cos(phase), x * jnp.sin(phase)], axis=1)
        x = x.astype(jnp.float32)
        B, C, T = x.shape
        assert C == self.nfft + 2, f"expected {self.nfft + 2} channels, got {C}"
        hop, K, n = self.hop_size, self.window_len, self.n_chunks
        hop_pad = self.hop_pad
        H = n - 1

        # --- T tiling: lane-aligned, bounded VMEM; >= 2 tiles when B == 1 so
        # both v7x TensorCores get work (on 1-TC chips it just means nT = 2). ---
        t_tile = self.t_tile
        if B == 1 and T > 256:
            t_tile = min(t_tile, _round_up(-(-T // 2), 128))
        if T <= t_tile:
            Tt = _round_up(max(T, H + 1), 8)      # single tile (block == full dim)
        else:
            Tt = _round_up(t_tile, 128)           # multi tile, lane-aligned
        nT = -(-T // Tt)
        T_pad = nT * Tt
        assert nT == 1 or Tt > H, "hop too small relative to window for this T tile"
        if T_pad > T:  # trailing zero frames contribute nothing and are cropped
            x = jnp.pad(x, ((0, 0), (0, 0), (0, T_pad - T)))

        # --- halo: the last H frames of the previous tile (zeros for tile 0) ---
        Hs = max(H, 1)
        if H > 0 and nT > 1:
            xr = x.reshape(B, C, nT, Tt)
            tail = jnp.transpose(xr[:, :, :nT - 1, Tt - H:], (0, 2, 1, 3))  # (B,nT-1,C,H)
            halo = jnp.concatenate(
                [jnp.zeros((B, 1, C, H), jnp.float32), tail], axis=1)
        else:
            halo = jnp.zeros((B, nT, C, Hs), jnp.float32)

        # Tiny resident normalization table, replicated across lanes.
        inv = jnp.broadcast_to(self.inv_ss[:, None], (hop_pad, Tt))

        out_t = _istft_pallas(x, halo, self.wt, inv, hop=hop, hop_pad=hop_pad,
                              n_chunks=n, Tt=Tt, compute_dtype=self.compute_dtype)
        # (B, nT, hop, Tt) lane-dense store -> time-major flat -> crop like torch.
        out_flat = jnp.transpose(out_t, (0, 1, 3, 2)).reshape(B, T_pad * hop)
        pad = K - hop
        return out_flat[:, pad:T * hop][:, None, :]   # (B, 1, L) NCL output


# ------------------------------ numpy reference ------------------------------

def _reference(x_np, weight, window, hop, K):
    B, C, T = x_np.shape
    L = (T - 1) * hop + K
    out = np.zeros((B, L), np.float64)
    for b in range(B):
        for t in range(T):
            frame = x_np[b, :, t].astype(np.float64) @ weight.astype(np.float64)
            out[b, t * hop:t * hop + K] += frame
    coeff = np.zeros((L,), np.float64)
    w32 = window.astype(np.float32)
    for t in range(T):
        coeff[t * hop:t * hop + K] += w32.astype(np.float64) ** 2
    out = out / (coeff + 1e-8)
    pad = K - hop
    return out[:, None, pad:L - pad]


# ----------------------------------- main ------------------------------------

if __name__ == "__main__":
    key = jax.random.PRNGKey(0)
    k1, k2, k3 = jax.random.split(key, 3)

    # Test 1: window_len=16 (nfft=16, C=18, hop=8), B=2, T=8 -> single T tile.
    model = ConviSTFTPallas(16)
    C = 16 + 2
    x = jax.random.normal(k1, (2, C, 8), dtype=jnp.float32)
    out = jax.block_until_ready(model(x, phase=None))
    ref = _reference(np.asarray(x), model.weight, model.window,
                     model.hop_size, 16)
    assert out.shape == ref.shape, (out.shape, ref.shape)
    np.testing.assert_allclose(np.asarray(out), ref, rtol=1e-4, atol=1e-4)

    # Test 2: B=1, T=300 -> T tiling (nT=2), halo carry and trailing padding.
    x2 = jax.random.normal(k2, (1, C, 300), dtype=jnp.float32)
    out2 = jax.block_until_ready(model(x2, phase=None))
    ref2 = _reference(np.asarray(x2), model.weight, model.window,
                      model.hop_size, 16)
    assert out2.shape == ref2.shape, (out2.shape, ref2.shape)
    np.testing.assert_allclose(np.asarray(out2), ref2, rtol=1e-4, atol=1e-4)

    # Test 3: window_len=12, hop=5 (K not a multiple of hop; n_chunks=3, H=2):
    # exercises sublane-padded chunks (hop_pad=8) and a 2-frame halo.
    model3 = ConviSTFTPallas(12, hop_size=5)
    C3 = model3.nfft + 2
    x3 = jax.random.normal(k3, (1, C3, 300), dtype=jnp.float32)
    out3 = jax.block_until_ready(model3(x3, phase=None))
    ref3 = _reference(np.asarray(x3), model3.weight, model3.window, 5, 12)
    assert out3.shape == ref3.shape, (out3.shape, ref3.shape)
    np.testing.assert_allclose(np.asarray(out3), ref3, rtol=1e-4, atol=1e-4)

    print("KERNEL_OK")
</pallas_src>

<mosaic_0001>
module attributes {stable_mosaic.version = 11 : i64} {
  func.func @kernel(%arg0: i32, %arg1: i32, %arg2: memref<1x18x8xf32, #tpu.memory_space<vmem>>, %arg3: memref<1x1x18x1xf32, #tpu.memory_space<vmem>>, %arg4: memref<16x18xf32, #tpu.memory_space<vmem>>, %arg5: memref<8x8xf32, #tpu.memory_space<vmem>>, %arg6: memref<1x1x8x8xf32, #tpu.memory_space<vmem>>) attributes {dimension_semantics = [#tpu.dimension_semantics<parallel>, #tpu.dimension_semantics<parallel>], iteration_bounds = array<i64: 2, 1>, scalar_prefetch = 0 : i64, scratch_operands = 0 : i64, tpu.core_type = #tpu.core_type<tc>, window_params = [{transform_indices = @transform_0, window_bounds = array<i64: 1, 18, 8>}, {transform_indices = @transform_1, window_bounds = array<i64: 1, 1, 18, 1>}, {pipeline_mode = #tpu.pipeline_mode<synchronous>, transform_indices = @transform_2, window_bounds = array<i64: 16, 18>}, {pipeline_mode = #tpu.pipeline_mode<synchronous>, transform_indices = @transform_3, window_bounds = array<i64: 8, 8>}, {transform_indices = @transform_4, window_bounds = array<i64: 1, 1, 8, 8>}]} {
    %c0 = arith.constant 0 : index
    %c0_0 = arith.constant 0 : index
    %0 = vector.load %arg4[%c0, %c0_0] : memref<16x18xf32, #tpu.memory_space<vmem>>, vector<16x18xf32>
    %c0_1 = arith.constant 0 : index
    %c0_2 = arith.constant 0 : index
    %c0_3 = arith.constant 0 : index
    %1 = vector.load %arg2[%c0_1, %c0_2, %c0_3] : memref<1x18x8xf32, #tpu.memory_space<vmem>>, vector<1x18x8xf32>
    %2 = vector.shape_cast %1 : vector<1x18x8xf32> to vector<18x8xf32>
    %cst = arith.constant dense<0.000000e+00> : vector<16x8xf32>
    %3 = tpu.matmul %0, %2, %cst {dimension_numbers = #tpu.dot_dimension_numbers<[1], [0], [0], [1], [0, 0, 1, 1], [], []>} : vector<16x18xf32>, vector<18x8xf32>, vector<16x8xf32> -> vector<16x8xf32>
    %4 = vector.extract_strided_slice %3 {offsets = [0, 0], sizes = [8, 8], strides = [1, 1]} : vector<16x8xf32> to vector<8x8xf32>
    %c0_4 = arith.constant 0 : index
    %c0_5 = arith.constant 0 : index
    %c0_6 = arith.constant 0 : index
    %c0_7 = arith.constant 0 : index
    %5 = vector.load %arg3[%c0_4, %c0_5, %c0_6, %c0_7] : memref<1x1x18x1xf32, #tpu.memory_space<vmem>>, vector<1x1x18x1xf32>
    %6 = vector.shape_cast %5 : vector<1x1x18x1xf32> to vector<18x1xf32>
    %cst_8 = arith.constant dense<0.000000e+00> : vector<16x1xf32>
    %7 = tpu.matmul %0, %6, %cst_8 {dimension_numbers = #tpu.dot_dimension_numbers<[1], [0], [0], [1], [0, 0, 1, 1], [], []>} : vector<16x18xf32>, vector<18x1xf32>, vector<16x1xf32> -> vector<16x1xf32>
    %8 = vector.extract_strided_slice %7 {offsets = [8, 0], sizes = [8, 1], strides = [1, 1]} : vector<16x1xf32> to vector<8x1xf32>
    %9 = vector.extract_strided_slice %3 {offsets = [8, 0], sizes = [8, 7], strides = [1, 1]} : vector<16x8xf32> to vector<8x7xf32>
    %10 = tpu.concatenate %8, %9 in 1 : vector<8x1xf32>, vector<8x7xf32> -> vector<8x8xf32>
    %11 = arith.addf %4, %10 : vector<8x8xf32>
    %c0_9 = arith.constant 0 : index
    %c0_10 = arith.constant 0 : index
    %12 = vector.load %arg5[%c0_9, %c0_10] : memref<8x8xf32, #tpu.memory_space<vmem>>, vector<8x8xf32>
    %13 = arith.mulf %11, %12 : vector<8x8xf32>
    %c0_11 = arith.constant 0 : index
    %c0_12 = arith.constant 0 : index
    %c0_13 = arith.constant 0 : index
    %c0_14 = arith.constant 0 : index
    %14 = vector.load %arg6[%c0_11, %c0_12, %c0_13, %c0_14] : memref<1x1x8x8xf32, #tpu.memory_space<vmem>>, vector<1x1x8x8xf32>
    %15 = vector.shape_cast %14 : vector<1x1x8x8xf32> to vector<8x8xf32>
    %16 = vector.shape_cast %13 : vector<8x8xf32> to vector<1x1x8x8xf32>
    tpu.vector_store %arg6[%c0_11, %c0_12, %c0_13, %c0_14], %16 {strides = array<i32>} : memref<1x1x8x8xf32, #tpu.memory_space<vmem>>, vector<1x1x8x8xf32>,
    return
  }
  func.func @transform_0(%arg0: i32, %arg1: i32) -> (i32, i32, i32) {
    %c0_i32 = arith.constant 0 : i32
    %c0_i32_0 = arith.constant 0 : i32
    return %arg0, %c0_i32, %arg1 : i32, i32, i32
  }
  func.func @transform_1(%arg0: i32, %arg1: i32) -> (i32, i32, i32, i32) {
    %c0_i32 = arith.constant 0 : i32
    %c0_i32_0 = arith.constant 0 : i32
    %c0_i32_1 = arith.constant 0 : i32
    return %arg0, %arg1, %c0_i32, %c0_i32_0 : i32, i32, i32, i32
  }
  func.func @transform_2(%arg0: i32, %arg1: i32) -> (i32, i32) {
    %c0_i32 = arith.constant 0 : i32
    %c0_i32_0 = arith.constant 0 : i32
    %c0_i32_1 = arith.constant 0 : i32
    return %c0_i32, %c0_i32_0 : i32, i32
  }
  func.func @transform_3(%arg0: i32, %arg1: i32) -> (i32, i32) {
    %c0_i32 = arith.constant 0 : i32
    %c0_i32_0 = arith.constant 0 : i32
    %c0_i32_1 = arith.constant 0 : i32
    return %c0_i32, %c0_i32_0 : i32, i32
  }
  func.func @transform_4(%arg0: i32, %arg1: i32) -> (i32, i32, i32, i32) {
    %c0_i32 = arith.constant 0 : i32
    %c0_i32_0 = arith.constant 0 : i32
    %c0_i32_1 = arith.constant 0 : i32
    return %arg0, %arg1, %c0_i32, %c0_i32_0 : i32, i32, i32, i32
  }
}

</mosaic_0001>

<llo_original>
// kernel: tpu_custom_call.1
$region0: #{tpu_custom_call.1}
  #allocation0 [shape = 'u32[]', space=smem, size = 0x4, offset = 0x4, fixed_abs, tag = 'smem constant byte address 0x4 - core index']
  #allocation1 [shape = 'u32[72,128]{1,0:T(1,128)}', space=vmem, size = 0x9000, scoped, tag = 'internal scratch']
  %s0 = inlined_call_operand.vmem [shape: f32[2,18,8], index: 0, kind: input, shape index: {}]
  %s1 = inlined_call_operand.vmem [shape: f32[2,1,18,1], index: 1, kind: input, shape index: {}]
  %s2 = inlined_call_operand.vmem [shape: f32[16,18], index: 2, kind: input, shape index: {}]
  %s3 = inlined_call_operand.vmem [shape: f32[8,8], index: 3, kind: input, shape index: {}]
  %s4 = inlined_call_operand.hbm [shape: f32[2,1,8,8], index: 4, kind: output, shape index: {}]
  %s5 = sld [smem:[#allocation0]]
  $region49: #{tpu_custom_call.1} parent=0
    _
  %s7 = ssub.s32 1, %s5
  %s8 = scalar_select 0, %s7, %s5
  $region1: #{tpu_custom_call.1} parent=0
    #allocation2 [shape = 'u8[8192]{0}', space=vmem, size = 0x2000, scoped, tag = 'output window, operand 0']
    #allocation3 [shape = 's32[2]{0}', space=sflag, size = 0x8, scoped, tag = 'scoped memory for tpu_custom_call.1']
    %9 = vsyncpa [#allocation3], 0
    %s10 = scalar_lea.sflag [#allocation3], 1
    %11 = vsyncpa %s10, 0
    loop: start=0, step=1, limit=4
    $region2: #{tpu_custom_call.1} parent=1 // loop_pre_header
      _
    $region3: #{tpu_custom_call.1} parent=1 // loop_header
      %s13 = sphi 0, %s17
      %p14 = scmp.ge.s32.totalorder %s13, 4
      %s20 = sphi 0, %s32
      %s21 = sphi 0, %s28
      %s22 = sphi 0, %s20
      %s23 = sphi 0, %s21
      %s24 = sphi 0, %s22
      %s25 = sphi 0, %s23
      %s37 = sphi 0, %s39
      %s40 = sphi 0, %s37
      %s41 = sphi 0, %s40
      %s57 = sphi 0, %s41
      %s65 = sphi 0, %s67
      %s68 = sphi 0, %s65
      %s69 = sphi 0, %s68
      %s85 = sphi 0, %s69
      %s89 = sphi 0, %s89
      %s91 = sphi 0, %s89
      %s92 = sphi 0, %s91
      %s106 = sphi 0, %s92
      %s110 = sphi 0, %s110
      %s112 = sphi 0, %s110
      %s113 = sphi 0, %s112
      %s127 = sphi 0, %s113
      %s135 = sphi 0, %s137
      %s138 = sphi 0, %s135
      %s139 = sphi 0, %s138
      %s155 = sphi 0, %s139
    $region4: #{tpu_custom_call.1} parent=1 // loop_header_branch
      %16 = sbr.rel (%p14) target = $region8
    $region5: #{tpu_custom_call.1} parent=1 // loop_body
      %s18 = ssub.s32 %s13, 1
      %s19 = ssub.s32 %s13, 2
      %s26 = sadd.s32 1, %s21
      %p27 = scmp.ge.s32.totalorder %s26, 1
      %s28 = scalar_select %p27, 0, %s26
      %s29 = sadd.s32 1, %s20
      %s30 = scalar_select %p27, %s29, %s20
      %p31 = scmp.ge.s32.totalorder %s30, 2
      %s32 = scalar_select %p31, 0, %s30
      %s33 = ssub.s32 %s20, %s32
      %s34 = ssub.s32 %s21, %s28
      %s35 = sor.u32 %s33, %s34
      %p36 = scmp.eq.s32.totalorder %s35, 0
      %s38 = sadd.s32 %s37, 1
      %s39 = scalar_select %p36, %s37, %s38
      %p42 = pneg %p36
      %p43 = scmp.eq.s32.totalorder %s13, 1
      %p44 = por %p42, %p43
      %p45 = scmp.ne.s32.totalorder %s37, %s40
      %p46 = scmp.eq.s32.totalorder %s13, 0
      %p47 = por %p45, %p46
      %p48 = scmp.ne.s32.totalorder %s37, %s40
      %p49 = scmp.eq.s32.totalorder %s18, 1
      %p50 = por %p48, %p49
      %p51 = scmp.ne.s32.totalorder %s40, %s41
      %p52 = scmp.eq.s32.totalorder %s18, 0
      %p53 = por %p51, %p52
      %p54 = scmp.ne.s32.totalorder %s40, %s41
      %p55 = scmp.eq.s32.totalorder %s19, 1
      %p56 = por %p54, %p55
      %p58 = scmp.ne.s32.totalorder %s41, %s57
      %p59 = scmp.eq.s32.totalorder %s19, 0
      %p60 = por %p58, %p59
      %s61 = ssub.s32 %s20, %s32
      %s62 = ssub.s32 %s21, %s28
      %s63 = sor.u32 %s61, %s62
      %p64 = scmp.eq.s32.totalorder %s63, 0
      %s66 = sadd.s32 %s65, 1
      %s67 = scalar_select %p64, %s65, %s66
      %p70 = pneg %p64
      %p71 = scmp.eq.s32.totalorder %s13, 1
      %p72 = por %p70, %p71
      %p73 = scmp.ne.s32.totalorder %s65, %s68
      %p74 = scmp.eq.s32.totalorder %s13, 0
      %p75 = por %p73, %p74
      %p76 = scmp.ne.s32.totalorder %s65, %s68
      %p77 = scmp.eq.s32.totalorder %s18, 1
      %p78 = por %p76, %p77
      %p79 = scmp.ne.s32.totalorder %s68, %s69
      %p80 = scmp.eq.s32.totalorder %s18, 0
      %p81 = por %p79, %p80
      %p82 = scmp.ne.s32.totalorder %s68, %s69
      %p83 = scmp.eq.s32.totalorder %s19, 1
      %p84 = por %p82, %p83
      %p86 = scmp.ne.s32.totalorder %s69, %s85
      %p87 = scmp.eq.s32.totalorder %s19, 0
      %p88 = por %p86, %p87
      %s90 = sadd.s32 %s89, 1
      %p93 = scmp.eq.s32.totalorder %s13, 1
      %p94 = scmp.ne.s32.totalorder %s89, %s91
      %p95 = scmp.eq.s32.totalorder %s13, 0
      %p96 = por %p94, %p95
      %p97 = scmp.ne.s32.totalorder %s89, %s91
      %p98 = scmp.eq.s32.totalorder %s18, 1
      %p99 = por %p97, %p98
      %p100 = scmp.ne.s32.totalorder %s91, %s92
      %p101 = scmp.eq.s32.totalorder %s18, 0
      %p102 = por %p100, %p101
      %p103 = scmp.ne.s32.totalorder %s91, %s92
      %p104 = scmp.eq.s32.totalorder %s19, 1
      %p105 = por %p103, %p104
      %p107 = scmp.ne.s32.totalorder %s92, %s106
      %p108 = scmp.eq.s32.totalorder %s19, 0
      %p109 = por %p107, %p108
      %s111 = sadd.s32 %s110, 1
      %p114 = scmp.eq.s32.totalorder %s13, 1
      %p115 = scmp.ne.s32.totalorder %s110, %s112
      %p116 = scmp.eq.s32.totalorder %s13, 0
      %p117 = por %p115, %p116
      %p118 = scmp.ne.s32.totalorder %s110, %s112
      %p119 = scmp.eq.s32.totalorder %s18, 1
      %p120 = por %p118, %p119
      %p121 = scmp.ne.s32.totalorder %s112, %s113
      %p122 = scmp.eq.s32.totalorder %s18, 0
      %p123 = por %p121, %p122
      %p124 = scmp.ne.s32.totalorder %s112, %s113
      %p125 = scmp.eq.s32.totalorder %s19, 1
      %p126 = por %p124, %p125
      %p128 = scmp.ne.s32.totalorder %s113, %s127
      %p129 = scmp.eq.s32.totalorder %s19, 0
      %p130 = por %p128, %p129
      %s131 = ssub.s32 %s20, %s32
      %s132 = ssub.s32 %s21, %s28
      %s133 = sor.u32 %s131, %s132
      %p134 = scmp.eq.s32.totalorder %s133, 0
      %s136 = sadd.s32 %s135, 1
      %s137 = scalar_select %p134, %s135, %s136
      %p140 = pneg %p134
      %p141 = scmp.eq.s32.totalorder %s13, 1
      %p142 = por %p140, %p141
      %p143 = scmp.ne.s32.totalorder %s135, %s138
      %p144 = scmp.eq.s32.totalorder %s13, 0
      %p145 = por %p143, %p144
      %p146 = scmp.ne.s32.totalorder %s135, %s138
      %p147 = scmp.eq.s32.totalorder %s18, 1
      %p148 = por %p146, %p147
      %p149 = scmp.ne.s32.totalorder %s138, %s139
      %p150 = scmp.eq.s32.totalorder %s18, 0
      %p151 = por %p149, %p150
      %p152 = scmp.ne.s32.totalorder %s138, %s139
      %p153 = scmp.eq.s32.totalorder %s19, 1
      %p154 = por %p152, %p153
      %p156 = scmp.ne.s32.totalorder %s139, %s155
      %p157 = scmp.eq.s32.totalorder %s19, 0
      %p158 = por %p156, %p157
      %p159 = scmp.le.s32.totalorder 1, %s13
      %p160 = scmp.lt.s32.totalorder %s13, 3
      %p161 = pnand %p159, %p160
      %p162 = pneg %p161
      // Predicated region
      $region9: #{tpu_custom_call.1} parent=5 // pred_check
        _
      $region10: #{tpu_custom_call.1} parent=5 // pred_check_branch
        %164 = sbr.rel (%p161) target = $region12
      $region11: #{tpu_custom_call.1} parent=5 // pred_region
        %s165 = ssub.s32 %s13, 1
        // Predicated region
        $region13: #{tpu_custom_call.1} parent=11 // pred_check
          %p166 = pneg %p102
        $region14: #{tpu_custom_call.1} parent=11 // pred_check_branch
          %168 = sbr.rel (%p166) target = $region16
        $region15: #{tpu_custom_call.1} parent=11 // pred_region
          _
        $region16: #{tpu_custom_call.1} parent=11 // pred_fallthru
          _
        // Predicated region
        $region17: #{tpu_custom_call.1} parent=11 // pred_check
          %p169 = pneg %p123
        $region18: #{tpu_custom_call.1} parent=11 // pred_check_branch
          %171 = sbr.rel (%p169) target = $region20
        $region19: #{tpu_custom_call.1} parent=11 // pred_region
          _
        $region20: #{tpu_custom_call.1} parent=11 // pred_fallthru
          _
      $region12: #{tpu_custom_call.1} parent=5 // pred_fallthru
        _
      %p172 = scmp.lt.s32.totalorder %s13, 2
      // Predicated region
      $region21: #{tpu_custom_call.1} parent=5 // pred_check
        %p173 = pneg %p172
      $region22: #{tpu_custom_call.1} parent=5 // pred_check_branch
        %175 = sbr.rel (%p173) target = $region24
      $region23: #{tpu_custom_call.1} parent=5 // pred_region
        // Predicated region
        $region25: #{tpu_custom_call.1} parent=23 // pred_check
          %p176 = pneg %p47
        $region26: #{tpu_custom_call.1} parent=23 // pred_check_branch
          %178 = sbr.rel (%p176) target = $region28
        $region27: #{tpu_custom_call.1} parent=23 // pred_region
          %p179 = scmp.lt.s32.totalorder %s20, 1
          %s180 = scalar_select %p179, %s20, 1
          %p181 = scmp.lt.s32.totalorder %s21, 0
          %s182 = scalar_select %p181, %s21, 0
          %s183 = smul.addr %s180, 3
          %s184 = sadd.s32 %s182, %s183
          %s185 = smul.addr %s184, 8
          %s186 = scalar_lea.vmem %s0, %s185
        $region28: #{tpu_custom_call.1} parent=23 // pred_fallthru
          _
        // Predicated region
        $region29: #{tpu_custom_call.1} parent=23 // pred_check
          %p187 = pneg %p75
        $region30: #{tpu_custom_call.1} parent=23 // pred_check_branch
          %189 = sbr.rel (%p187) target = $region32
        $region31: #{tpu_custom_call.1} parent=23 // pred_region
          %p190 = scmp.lt.s32.totalorder %s20, 1
          %s191 = scalar_select %p190, %s20, 1
          %p192 = scmp.lt.s32.totalorder %s21, 0
          %s193 = scalar_select %p192, %s21, 0
          %s194 = smul.addr %s193, 3
          %s195 = smul.addr %s191, 3
          %s196 = sadd.s32 %s194, %s195
          %s197 = smul.addr %s196, 8
          %s198 = scalar_lea.vmem %s1, %s197
        $region32: #{tpu_custom_call.1} parent=23 // pred_fallthru
          _
      $region24: #{tpu_custom_call.1} parent=5 // pred_fallthru
        _
      %p199 = scmp.le.s32.totalorder 1, %s13
      %p200 = scmp.lt.s32.totalorder %s13, 3
      %p201 = pnand %p199, %p200
      %p202 = pneg %p201
      // Predicated region
      $region33: #{tpu_custom_call.1} parent=5 // pred_check
        _
      $region34: #{tpu_custom_call.1} parent=5 // pred_check_branch
        %204 = sbr.rel (%p201) target = $region36
      $region35: #{tpu_custom_call.1} parent=5 // pred_region
        %s205 = ssub.s32 %s13, 1
        %p206 = scmp.lt.s32.totalorder %s22, 1
        %s207 = scalar_select %p206, %s22, 1
        %p208 = scmp.lt.s32.totalorder %s23, 0
        %s209 = scalar_select %p208, %s23, 0
        %s210 = smul.addr %s207, 3
        %s211 = sadd.s32 %s209, %s210
        %s212 = smul.addr %s211, 8
        %s213 = scalar_lea.vmem %s0, %s212
        %p214 = pneg %p53
        %p215 = pneg %p50
        %p216 = scmp.lt.s32.totalorder %s22, 1
        %s217 = scalar_select %p216, %s22, 1
        %p218 = scmp.lt.s32.totalorder %s23, 0
        %s219 = scalar_select %p218, %s23, 0
        %s220 = smul.addr %s219, 3
        %s221 = smul.addr %s217, 3
        %s222 = sadd.s32 %s220, %s221
        %s223 = smul.addr %s222, 8
        %s224 = scalar_lea.vmem %s1, %s223
        %p225 = pneg %p81
        %p226 = pneg %p78
        %p227 = pneg %p102
        %p228 = pneg %p99
        %p229 = pneg %p123
        %p230 = pneg %p120
        %p231 = pneg %p151
        %p232 = pneg %p148
        %s233 = sand.u32 %s138, 1
        %s234 = scalar_lea.sflag [#allocation3], %s233
        %s235 = sand.u32 %s138, 1
        %s236 = smul.addr %s235, 8
        %s237 = scalar_lea.vmem [#allocation2], %s236
        %p238 = scmp.lt.s32.totalorder %s22, 1
        %s239 = scalar_select %p238, %s22, 1
        %p240 = scmp.lt.s32.totalorder %s23, 0
        %s241 = scalar_select %p240, %s23, 0
        %s242 = smul.addr %s239, 3
        %s243 = sadd.s32 %s241, %s242
        %s244 = smul.addr %s243, 8
        %s245 = scalar_lea.vmem %s0, %s244
        %p246 = scmp.lt.s32.totalorder %s22, 1
        %s247 = scalar_select %p246, %s22, 1
        %p248 = scmp.lt.s32.totalorder %s23, 0
        %s249 = scalar_select %p248, %s23, 0
        %s250 = smul.addr %s249, 3
        %s251 = smul.addr %s247, 3
        %s252 = sadd.s32 %s250, %s251
        %s253 = smul.addr %s252, 8
        %s254 = scalar_lea.vmem %s1, %s253
        %v255 = vld [vmem:[%s2] sm:$0xff]
        %v256 = vld [vmem:[%s2 + $0x8] sm:$0xff]
        %v257 = vld [vmem:[%s245] sm:$0xff]
        %v258 = vld [vmem:[%s245 + $0x8] sm:$0xff]
        %v259 = vld [vmem:[%s245 + $0x10] sm:$0x3]
        %vm260 = vcmask 146432
        %v262 = vsel %vm260, %v255, 0
        %v265 = vsel %vm260, %v256, 0
        %vm267 = vcmask 1041408
        %v269 = vsel %vm267, %v259, 0
        %271 = vmatpush.msra.mxu0 0.0
        %272 = vmatpush.msra.mxu0 0.0
        %273 = vmatpush.msra.mxu0 0.0
        %274 = vmatpush.msra.mxu0 0.0
        %275 = vmatpush.msra.mxu0 0.0
        %276 = vmatpush.msra.mxu0 0.0
        %277 = vmatpush.msra.mxu0 0.0
        %278 = vmatpush.msra.mxu0 0.0
        %279 = vmatpush.msra.mxu0 0.0
        %280 = vmatpush.msra.mxu0 0.0
        %281 = vmatpush.msra.mxu0 0.0
        %282 = vmatpush.msra.mxu0 0.0
        %283 = vmatpush.msra.mxu0 0.0
        %284 = vmatpush.msra.mxu0 %v269
        %285 = vmatpush.msra.mxu0 %v258
        %286 = vmatpush.msra.mxu0 %v257
        %287 = vmatmul.f32.gmra.mxu0 %v262
        %v288 = vpop.f32.mrf.mxu0
        %v289 = vadd.f32 0.0, %v288
        %290 = vmatmul.f32.gmra.mxu0 %v265
        %v291 = vpop.f32.mrf.mxu0
        %v292 = vadd.f32 0.0, %v291
        %293 = vdwg.mxu0
        %v294 = vld [vmem:[%s254] sm:$0xff]
        %v295 = vld [vmem:[%s254 + $0x8] sm:$0xff]
        %v296 = vld [vmem:[%s254 + $0x10] sm:$0x3]
        %v298 = vsel %vm267, %v296, 0
        %300 = vmatpush.msra.mxu0 0.0
        %301 = vmatpush.msra.mxu0 0.0
        %302 = vmatpush.msra.mxu0 0.0
        %303 = vmatpush.msra.mxu0 0.0
        %304 = vmatpush.msra.mxu0 0.0
        %305 = vmatpush.msra.mxu0 0.0
        %306 = vmatpush.msra.mxu0 0.0
        %307 = vmatpush.msra.mxu0 0.0
        %308 = vmatpush.msra.mxu0 0.0
        %309 = vmatpush.msra.mxu0 0.0
        %310 = vmatpush.msra.mxu0 0.0
        %311 = vmatpush.msra.mxu0 0.0
        %312 = vmatpush.msra.mxu0 0.0
        %313 = vmatpush.msra.mxu0 %v298
        %314 = vmatpush.msra.mxu0 %v295
        %315 = vmatpush.msra.mxu0 %v294
        %316 = vmatmul.f32.gmra.mxu0 %v262
        %v317 = vpop.f32.mrf.mxu0
        %318 = vmatmul.f32.gmra.mxu0 %v265
        %v319 = vpop.f32.mrf.mxu0
        %v320 = vadd.f32 0.0, %v319
        %321 = vdwg.mxu0
        %323 = vrot.lane.b32.xlu0 %v292, 1
        %v324 = vpop.permute.xlu0 %323
        %vm326 = vcmask 7168
        %v327 = vsel %vm326, %v320, %v324
        %v328 = vadd.f32 %v289, %v327
        %v329 = vld [vmem:[%s3] sm:$0xff]
        %v330 = vmul.f32 %v328, %v329
        %vm331 = vcmask 64512
        %332 = vst.msk [vmem:[%s237] sm:$0xff] %vm331, %v330
        %s333 = sand.u32 %s138, 1
        %s334 = scalar_lea.sflag [#allocation3], %s333
        %s335 = sand.u32 %s138, 1
        %s336 = smul.addr %s335, 8
        %s337 = scalar_lea.vmem [#allocation2], %s336
        // Predicated region
        $region37: #{tpu_custom_call.1} parent=35 // pred_check
          %p338 = pneg %p148
        $region38: #{tpu_custom_call.1} parent=35 // pred_check_branch
          %340 = sbr.rel (%p338) target = $region40
        $region39: #{tpu_custom_call.1} parent=35 // pred_region
          %342 = vsyncadd %s334, 0
          %s343 = sadd.s32 %s23, %s22
          %s344 = smul.addr %s343, 8
          %s345 = scalar_lea.hbm %s4, %s344
          %s347 = sshll.u32 %s337, 4
          %s348 = int_to_ptr.vmem [resolvable:$true] %s347
          %s349 = sshll.u32 %s345, 4
          %s350 = int_to_ptr.hbm [resolvable:$true] %s349
          %352 = dma.vmem_to_hbm [thread:$0]  %s348, 128, %s350, %s334
        $region40: #{tpu_custom_call.1} parent=35 // pred_fallthru
          _
      $region36: #{tpu_custom_call.1} parent=5 // pred_fallthru
        _
      %p353 = scmp.le.s32.totalorder 2, %s13
      // Predicated region
      $region41: #{tpu_custom_call.1} parent=5 // pred_check
        %p354 = pneg %p353
      $region42: #{tpu_custom_call.1} parent=5 // pred_check_branch
        %356 = sbr.rel (%p354) target = $region44
      $region43: #{tpu_custom_call.1} parent=5 // pred_region
        %s357 = ssub.s32 %s13, 2
        // Predicated region
        $region45: #{tpu_custom_call.1} parent=43 // pred_check
          %p358 = pneg %p154
        $region46: #{tpu_custom_call.1} parent=43 // pred_check_branch
          %360 = sbr.rel (%p358) target = $region48
        $region47: #{tpu_custom_call.1} parent=43 // pred_region
          %s361 = sand.u32 %s139, 1
          %s362 = scalar_lea.sflag [#allocation3], %s361
          %s363 = sand.u32 %s139, 1
          %s364 = smul.addr %s363, 8
          %s365 = scalar_lea.vmem [#allocation2], %s364
          %367 = dma.done %s362, 128
        $region48: #{tpu_custom_call.1} parent=43 // pred_fallthru
          _
      $region44: #{tpu_custom_call.1} parent=5 // pred_fallthru
        _
    $region6: #{tpu_custom_call.1} parent=1 // loop_footer
      %s17 = sadd.s32 1, %s13
    $region7: #{tpu_custom_call.1} parent=1 // loop_footer_branch
      %12 = sbr.rel target = $region3
    $region8: #{tpu_custom_call.1} parent=1 // loop_exit
      _
    %368 = vsyncpa [#allocation3], 1
    %s369 = scalar_lea.sflag [#allocation3], 1
    %370 = vsyncpa %s369, 1

</llo_original>
